<compile_context>
chip_gen: v7x
topology: tpu7x:2x2x1
jax: 0.10.0
libtpu: 0.0.40
codegen_flags: <defaults>
</compile_context>

<pallas_src>
import functools

import jax
import jax.numpy as jnp
from jax.experimental import pallas as pl
from jax.experimental.pallas import tpu as pltpu


HIDDEN = 20            # nn.Linear(input_size, 20)
REG_IN = 2 * HIDDEN    # nn.Linear(40, 1)
LANES = 128

_TARGET_STEP_BYTES = 4 << 20     # combined X_left+X_right bytes per grid step
_VMEM_ROW_BUDGET = 24 << 20      # budget for the per-row (tile-proportional) VMEM

_ACTIVATIONS = {
    "relu": lambda x: jnp.maximum(x, 0.0),
    "tanh": jnp.tanh,
    "sigmoid": jax.nn.sigmoid,
    "identity": lambda x: x,
}


def _cdiv(a, b):
    return -(-a // b)


def _round_up(x, m):
    return ((x + m - 1) // m) * m


def _lane(n):
    return _round_up(max(int(n), 1), 128)


def _sub(n):
    return _round_up(max(int(n), 1), 8)


def _prenet_kernel(xl_ref, xr_ref, wf_ref, bf_ref, wrl_ref, wrr_ref, br_ref,
                   out_ref, *, act):
    """One batch tile of the forward pass (works for packed & unpacked layouts).

    xl_ref, xr_ref : (T, d_in)          batch tile of X_left / X_right
    wf_ref         : (d_in, h)          feature Linear weight (block-diag if packed)
    bf_ref         : (1, h)             feature bias (tiled if packed)
    wrl_ref        : (h, out_cols)      reg weight rows for "left" features
    wrr_ref        : (h, out_cols)      reg weight rows for "right" features
    br_ref         : (1, out_cols)      reg bias
    out_ref        : (T, out_cols)      scores
    """
    wf = wf_ref[...]
    bf = bf_ref[...]

    # feature(X_left) / feature(X_right): Linear + activation
    fl = act(jnp.dot(xl_ref[...], wf, preferred_element_type=jnp.float32) + bf)
    fr = act(jnp.dot(xr_ref[...], wf, preferred_element_type=jnp.float32) + bf)

    # reg(cat([fl, fr], dim=1)) == fl @ w_reg[:20] + fr @ w_reg[20:] + b_reg
    out_ref[...] = (
        jnp.dot(fl, wrl_ref[...], preferred_element_type=jnp.float32)
        + jnp.dot(fr, wrr_ref[...], preferred_element_type=jnp.float32)
        + br_ref[...]
    )


def _choose_tile_rows(rows, d_in, h, out_cols):
    """Tile rows: big enough that per-step DMA dwarfs per-step overhead, small
    enough for the (lane-padded, double-buffered) VMEM footprint, and leaving
    >= 2 grid steps when there is enough work (v7x megacore sharding)."""
    per_row_bytes = (2 * 2 * _lane(d_in) + 2 * _lane(h) + 2 * _lane(out_cols)) * 4
    t_vmem = max(8, (_VMEM_ROW_BUDGET // per_row_bytes) // 8 * 8)
    t_dma = _cdiv(_TARGET_STEP_BYTES, 2 * _lane(d_in) * 4)
    t = min(max(t_dma, 8), t_vmem)
    half = _round_up(_cdiv(rows, 2), 8)
    if rows >= 16 and t > half:
        t = half                     # guarantee >= 2 grid steps
    if t >= rows:
        return rows                  # single full-extent block (any row count OK)
    return max(8, (t // 8) * 8)


def _vmem_limit_bytes(t, d_in, h, out_cols):
    """Lane-padded footprint: inputs (x2 streams, double-buffered), fl/fr
    intermediates, weight blocks, biases, output tile — plus margin."""
    f = 4
    total = (
        2 * 2 * t * _lane(d_in) * f            # X_left / X_right, double-buffered
        + 2 * t * _lane(h) * f                 # fl / fr intermediates
        + 2 * t * _lane(out_cols) * f          # output tile, double-buffered
        + 2 * _sub(d_in) * _lane(h) * f        # w_feat block
        + 2 * _sub(1) * _lane(h) * f           # b_feat
        + 2 * 2 * _sub(h) * _lane(out_cols) * f  # wr_left / wr_right
        + 2 * _sub(1) * _lane(out_cols) * f    # b_reg
    )
    total = int(total * 1.25) + (2 << 20)
    return max(16 << 20, min(total, 48 << 20))


def prenet_forward(x_left, x_right, w_feat, b_feat, w_reg, b_reg,
                   *, activation="relu", tile_rows=None):
    """Pallas forward. Returns scores of shape (B,)."""
    B, D = x_left.shape
    assert x_right.shape == (B, D)
    assert w_feat.shape == (D, HIDDEN)
    assert w_reg.shape == (REG_IN, 1)
    assert activation in _ACTIVATIONS, f"unsupported activation {activation!r}"
    act = _ACTIVATIONS[activation]

    b_feat = b_feat.reshape(1, HIDDEN).astype(jnp.float32)
    b_reg = b_reg.reshape(1, 1).astype(jnp.float32)
    wr_left = w_reg[:HIDDEN, :]                      # (20, 1)
    wr_right = w_reg[HIDDEN:, :]                     # (20, 1)

    # --- lane packing: view PACK samples per row when D << 128 (free reshape) ---
    pack = max(1, LANES // D) if D <= LANES // 2 else 1
    use_packed = pack > 1 and B % pack == 0
    if use_packed:
        rows = B // pack
        d_in = pack * D
        h = pack * HIDDEN
        out_cols = pack
        xl = x_left.reshape(rows, d_in)              # contiguous view, no copy
        xr = x_right.reshape(rows, d_in)
        eye = jnp.eye(pack, dtype=w_feat.dtype)
        wf = jnp.kron(eye, w_feat)                   # (pack*D, pack*20) block-diag
        bf = jnp.tile(b_feat, (1, pack))             # (1, pack*20)
        wrl = jnp.kron(eye, wr_left)                 # (pack*20, pack) block-diag
        wrr = jnp.kron(eye, wr_right)
        br = jnp.tile(b_reg, (1, pack))              # (1, pack)
    else:
        rows, d_in, h, out_cols = B, D, HIDDEN, 1
        xl, xr = x_left, x_right
        wf, bf, wrl, wrr, br = w_feat, b_feat, wr_left, wr_right, b_reg

    # bf16-friendly: keep matmul operands in the (narrow) input dtype, accumulate f32.
    if x_left.dtype != jnp.float32:
        wf = wf.astype(x_left.dtype)
        wrl = wrl.astype(x_left.dtype)
        wrr = wrr.astype(x_left.dtype)

    if tile_rows is not None:
        T = int(tile_rows)
        T = rows if T >= rows else max(8, (T // 8) * 8)
    else:
        T = _choose_tile_rows(rows, d_in, h, out_cols)

    grid = (_cdiv(rows, T),)                         # ragged last block: no jnp.pad

    x_spec = pl.BlockSpec((T, d_in), lambda i: (i, 0))
    const = lambda shape: pl.BlockSpec(shape, lambda i, _s=shape: (0,) * len(_s))

    scores = pl.pallas_call(
        functools.partial(_prenet_kernel, act=act),
        out_shape=jax.ShapeDtypeStruct((rows, out_cols), jnp.float32),
        grid=grid,
        in_specs=[
            x_spec,                 # X_left tile
            x_spec,                 # X_right tile
            const(wf.shape),        # feature weight (VMEM-resident, constant map)
            const(bf.shape),        # feature bias
            const(wrl.shape),       # reg weight, left half
            const(wrr.shape),       # reg weight, right half
            const(br.shape),        # reg bias
        ],
        out_specs=pl.BlockSpec((T, out_cols), lambda i: (i, 0)),
        compiler_params=pltpu.CompilerParams(
            dimension_semantics=("parallel",),       # megacore sharding on v7x
            vmem_limit_bytes=_vmem_limit_bytes(T, d_in, h, out_cols),
        ),
    )(xl, xr, wf, bf, wrl, wrr, br)

    # packed: (rows, pack) row-major == original sample order; general: (B, 1).
    return scores.reshape(B)


def init_params(key, input_size):
    """Deterministic PyTorch-Linear-style init: U(-1/sqrt(fan_in), 1/sqrt(fan_in))."""
    k1, k2, k3, k4 = jax.random.split(key, 4)
    bound_f = 1.0 / jnp.sqrt(jnp.float32(input_size))
    bound_r = 1.0 / jnp.sqrt(jnp.float32(REG_IN))
    w_feat = jax.random.uniform(k1, (input_size, HIDDEN), jnp.float32, -bound_f, bound_f)
    b_feat = jax.random.uniform(k2, (1, HIDDEN), jnp.float32, -bound_f, bound_f)
    w_reg = jax.random.uniform(k3, (REG_IN, 1), jnp.float32, -bound_r, bound_r)
    b_reg = jax.random.uniform(k4, (1, 1), jnp.float32, -bound_r, bound_r)
    return w_feat, b_feat, w_reg, b_reg


def _reference(x_left, x_right, w_feat, b_feat, w_reg, b_reg):
    fl = jnp.maximum(x_left @ w_feat + b_feat, 0.0)
    fr = jnp.maximum(x_right @ w_feat + b_feat, 0.0)
    return jnp.squeeze(jnp.concatenate([fl, fr], axis=1) @ w_reg + b_reg, axis=-1)


if __name__ == "__main__":
    key = jax.random.PRNGKey(0)
    kx, kp = jax.random.split(key)
    D = 16
    w_feat, b_feat, w_reg, b_reg = init_params(kp, D)

    # 1) Lane-packed path: B % 8 == 0 -> inputs viewed as (B/8, 128), 2 grid steps.
    B1 = 256
    k1, k2 = jax.random.split(kx)
    xl1 = jax.random.normal(k1, (B1, D), jnp.float32)
    xr1 = jax.random.normal(k2, (B1, D), jnp.float32)
    s1 = jax.block_until_ready(prenet_forward(xl1, xr1, w_feat, b_feat, w_reg, b_reg))
    r1 = _reference(xl1, xr1, w_feat, b_feat, w_reg, b_reg)
    assert s1.shape == (B1,)
    assert jnp.allclose(s1, r1, atol=1e-5, rtol=1e-5)

    # 2) General path with a ragged last block (no wrapper-side padding at all).
    B2 = 203
    k3, k4 = jax.random.split(jax.random.PRNGKey(1))
    xl2 = jax.random.normal(k3, (B2, D), jnp.float32)
    xr2 = jax.random.normal(k4, (B2, D), jnp.float32)
    s2 = jax.block_until_ready(
        prenet_forward(xl2, xr2, w_feat, b_feat, w_reg, b_reg, tile_rows=64))
    r2 = _reference(xl2, xr2, w_feat, b_feat, w_reg, b_reg)
    assert s2.shape == (B2,)
    assert jnp.allclose(s2, r2, atol=1e-5, rtol=1e-5)

    # 3) Tiny batch sanity (single full-extent block).
    B3 = 8
    xl3 = xl1[:B3]
    xr3 = xr1[:B3]
    s3 = jax.block_until_ready(prenet_forward(xl3, xr3, w_feat, b_feat, w_reg, b_reg))
    assert jnp.allclose(s3, r1[:B3], atol=1e-5, rtol=1e-5)

    print("KERNEL_OK")
</pallas_src>

<mosaic_0001>
module attributes {stable_mosaic.version = 11 : i64} {
  func.func @_prenet_kernel(%arg0: i32, %arg1: memref<16x128xf32, #tpu.memory_space<vmem>>, %arg2: memref<16x128xf32, #tpu.memory_space<vmem>>, %arg3: memref<128x160xf32, #tpu.memory_space<vmem>>, %arg4: memref<1x160xf32, #tpu.memory_space<vmem>>, %arg5: memref<160x8xf32, #tpu.memory_space<vmem>>, %arg6: memref<160x8xf32, #tpu.memory_space<vmem>>, %arg7: memref<1x8xf32, #tpu.memory_space<vmem>>, %arg8: memref<16x8xf32, #tpu.memory_space<vmem>>) attributes {dimension_semantics = [#tpu.dimension_semantics<parallel>], iteration_bounds = array<i64: 2>, scalar_prefetch = 0 : i64, scratch_operands = 0 : i64, tpu.core_type = #tpu.core_type<tc>, window_params = [{transform_indices = @transform_0, window_bounds = array<i64: 16, 128>}, {transform_indices = @transform_1, window_bounds = array<i64: 16, 128>}, {pipeline_mode = #tpu.pipeline_mode<synchronous>, transform_indices = @transform_2, window_bounds = array<i64: 128, 160>}, {pipeline_mode = #tpu.pipeline_mode<synchronous>, transform_indices = @transform_3, window_bounds = array<i64: 1, 160>}, {pipeline_mode = #tpu.pipeline_mode<synchronous>, transform_indices = @transform_4, window_bounds = array<i64: 160, 8>}, {pipeline_mode = #tpu.pipeline_mode<synchronous>, transform_indices = @transform_5, window_bounds = array<i64: 160, 8>}, {pipeline_mode = #tpu.pipeline_mode<synchronous>, transform_indices = @transform_6, window_bounds = array<i64: 1, 8>}, {transform_indices = @transform_7, window_bounds = array<i64: 16, 8>}]} {
    %c0 = arith.constant 0 : index
    %c0_0 = arith.constant 0 : index
    %0 = vector.load %arg3[%c0, %c0_0] : memref<128x160xf32, #tpu.memory_space<vmem>>, vector<128x160xf32>
    %c0_1 = arith.constant 0 : index
    %c0_2 = arith.constant 0 : index
    %1 = vector.load %arg4[%c0_1, %c0_2] : memref<1x160xf32, #tpu.memory_space<vmem>>, vector<1x160xf32>
    %c0_3 = arith.constant 0 : index
    %c0_4 = arith.constant 0 : index
    %2 = vector.load %arg1[%c0_3, %c0_4] : memref<16x128xf32, #tpu.memory_space<vmem>>, vector<16x128xf32>
    %cst = arith.constant dense<0.000000e+00> : vector<16x160xf32>
    %3 = tpu.matmul %2, %0, %cst {dimension_numbers = #tpu.dot_dimension_numbers<[1], [0], [0], [1], [0, 0, 1, 1], [], []>} : vector<16x128xf32>, vector<128x160xf32>, vector<16x160xf32> -> vector<16x160xf32>
    %4 = vector.broadcast %1 : vector<1x160xf32> to vector<16x160xf32>
    %5 = arith.addf %3, %4 : vector<16x160xf32>
    %cst_5 = arith.constant 0.000000e+00 : f32
    %6 = vector.broadcast %cst_5 : f32 to vector<16x160xf32>
    %7 = arith.maximumf %5, %6 : vector<16x160xf32>
    %c0_6 = arith.constant 0 : index
    %c0_7 = arith.constant 0 : index
    %8 = vector.load %arg2[%c0_6, %c0_7] : memref<16x128xf32, #tpu.memory_space<vmem>>, vector<16x128xf32>
    %cst_8 = arith.constant dense<0.000000e+00> : vector<16x160xf32>
    %9 = tpu.matmul %8, %0, %cst_8 {dimension_numbers = #tpu.dot_dimension_numbers<[1], [0], [0], [1], [0, 0, 1, 1], [], []>} : vector<16x128xf32>, vector<128x160xf32>, vector<16x160xf32> -> vector<16x160xf32>
    %10 = vector.broadcast %1 : vector<1x160xf32> to vector<16x160xf32>
    %11 = arith.addf %9, %10 : vector<16x160xf32>
    %cst_9 = arith.constant 0.000000e+00 : f32
    %12 = vector.broadcast %cst_9 : f32 to vector<16x160xf32>
    %13 = arith.maximumf %11, %12 : vector<16x160xf32>
    %c0_10 = arith.constant 0 : index
    %c0_11 = arith.constant 0 : index
    %14 = vector.load %arg5[%c0_10, %c0_11] : memref<160x8xf32, #tpu.memory_space<vmem>>, vector<160x8xf32>
    %cst_12 = arith.constant dense<0.000000e+00> : vector<16x8xf32>
    %15 = tpu.matmul %7, %14, %cst_12 {dimension_numbers = #tpu.dot_dimension_numbers<[1], [0], [0], [1], [0, 0, 1, 1], [], []>} : vector<16x160xf32>, vector<160x8xf32>, vector<16x8xf32> -> vector<16x8xf32>
    %c0_13 = arith.constant 0 : index
    %c0_14 = arith.constant 0 : index
    %16 = vector.load %arg6[%c0_13, %c0_14] : memref<160x8xf32, #tpu.memory_space<vmem>>, vector<160x8xf32>
    %cst_15 = arith.constant dense<0.000000e+00> : vector<16x8xf32>
    %17 = tpu.matmul %13, %16, %cst_15 {dimension_numbers = #tpu.dot_dimension_numbers<[1], [0], [0], [1], [0, 0, 1, 1], [], []>} : vector<16x160xf32>, vector<160x8xf32>, vector<16x8xf32> -> vector<16x8xf32>
    %18 = arith.addf %15, %17 : vector<16x8xf32>
    %c0_16 = arith.constant 0 : index
    %c0_17 = arith.constant 0 : index
    %19 = vector.load %arg7[%c0_16, %c0_17] : memref<1x8xf32, #tpu.memory_space<vmem>>, vector<1x8xf32>
    %20 = vector.broadcast %19 : vector<1x8xf32> to vector<16x8xf32>
    %21 = arith.addf %18, %20 : vector<16x8xf32>
    %c0_18 = arith.constant 0 : index
    %c0_19 = arith.constant 0 : index
    %22 = vector.load %arg8[%c0_18, %c0_19] : memref<16x8xf32, #tpu.memory_space<vmem>>, vector<16x8xf32>
    tpu.vector_store %arg8[%c0_18, %c0_19], %21 {strides = array<i32>} : memref<16x8xf32, #tpu.memory_space<vmem>>, vector<16x8xf32>,
    return
  }
  func.func @transform_0(%arg0: i32) -> (i32, i32) {
    %c0_i32 = arith.constant 0 : i32
    %c0_i32_0 = arith.constant 0 : i32
    return %arg0, %c0_i32 : i32, i32
  }
  func.func @transform_1(%arg0: i32) -> (i32, i32) {
    %c0_i32 = arith.constant 0 : i32
    %c0_i32_0 = arith.constant 0 : i32
    return %arg0, %c0_i32 : i32, i32
  }
  func.func @transform_2(%arg0: i32) -> (i32, i32) {
    %c0_i32 = arith.constant 0 : i32
    %c0_i32_0 = arith.constant 0 : i32
    %c0_i32_1 = arith.constant 0 : i32
    return %c0_i32, %c0_i32_0 : i32, i32
  }
  func.func @transform_3(%arg0: i32) -> (i32, i32) {
    %c0_i32 = arith.constant 0 : i32
    %c0_i32_0 = arith.constant 0 : i32
    %c0_i32_1 = arith.constant 0 : i32
    return %c0_i32, %c0_i32_0 : i32, i32
  }
  func.func @transform_4(%arg0: i32) -> (i32, i32) {
    %c0_i32 = arith.constant 0 : i32
    %c0_i32_0 = arith.constant 0 : i32
    %c0_i32_1 = arith.constant 0 : i32
    return %c0_i32, %c0_i32_0 : i32, i32
  }
  func.func @transform_5(%arg0: i32) -> (i32, i32) {
    %c0_i32 = arith.constant 0 : i32
    %c0_i32_0 = arith.constant 0 : i32
    %c0_i32_1 = arith.constant 0 : i32
    return %c0_i32, %c0_i32_0 : i32, i32
  }
  func.func @transform_6(%arg0: i32) -> (i32, i32) {
    %c0_i32 = arith.constant 0 : i32
    %c0_i32_0 = arith.constant 0 : i32
    %c0_i32_1 = arith.constant 0 : i32
    return %c0_i32, %c0_i32_0 : i32, i32
  }
  func.func @transform_7(%arg0: i32) -> (i32, i32) {
    %c0_i32 = arith.constant 0 : i32
    %c0_i32_0 = arith.constant 0 : i32
    return %arg0, %c0_i32 : i32, i32
  }
}

</mosaic_0001>

<llo_original>
// kernel: tpu_custom_call.1
$region0: #{tpu_custom_call.1}
  #allocation0 [shape = 'u32[]', space=smem, size = 0x4, offset = 0x4, fixed_abs, tag = 'smem constant byte address 0x4 - core index']
  #allocation1 [shape = 'u32[144,128]{1,0:T(1,128)}', space=vmem, size = 0x12000, scoped, tag = 'internal scratch']
  %s0 = inlined_call_operand.vmem [shape: f32[32,128], index: 0, kind: input, shape index: {}]
  %s1 = inlined_call_operand.vmem [shape: f32[32,128], index: 1, kind: input, shape index: {}]
  %s2 = inlined_call_operand.vmem [shape: f32[128,160], index: 2, kind: input, shape index: {}]
  %s3 = inlined_call_operand.vmem [shape: f32[1,160], index: 3, kind: input, shape index: {}]
  %s4 = inlined_call_operand.vmem [shape: f32[160,8], index: 4, kind: input, shape index: {}]
  %s5 = inlined_call_operand.vmem [shape: f32[160,8], index: 5, kind: input, shape index: {}]
  %s6 = inlined_call_operand.vmem [shape: f32[1,8], index: 6, kind: input, shape index: {}]
  %s7 = inlined_call_operand.vmem [shape: f32[32,8], index: 7, kind: output, shape index: {}]
  %s8 = sld [smem:[#allocation0]]
  $region61: #{tpu_custom_call.1} parent=0
    _
  %s10 = ssub.s32 1, %s8
  %s11 = scalar_select 0, %s10, %s8
  loop: start=0, step=1, limit=4
  $region2: #{tpu_custom_call.1} parent=0 // loop_pre_header
    _
  $region3: #{tpu_custom_call.1} parent=0 // loop_header
    %s13 = sphi 0, %s17
    %p14 = scmp.ge.s32.totalorder %s13, 4
    %s23 = sphi 0, %s25
    %s26 = sphi 0, %s23
    %s27 = sphi 0, %s26
    %s43 = sphi 0, %s27
    %s49 = sphi 0, %s51
    %s52 = sphi 0, %s49
    %s53 = sphi 0, %s52
    %s69 = sphi 0, %s53
    %s73 = sphi 0, %s73
    %s75 = sphi 0, %s73
    %s76 = sphi 0, %s75
    %s90 = sphi 0, %s76
    %s94 = sphi 0, %s94
    %s96 = sphi 0, %s94
    %s97 = sphi 0, %s96
    %s111 = sphi 0, %s97
    %s115 = sphi 0, %s115
    %s117 = sphi 0, %s115
    %s118 = sphi 0, %s117
    %s132 = sphi 0, %s118
    %s136 = sphi 0, %s136
    %s138 = sphi 0, %s136
    %s139 = sphi 0, %s138
    %s153 = sphi 0, %s139
    %s157 = sphi 0, %s157
    %s159 = sphi 0, %s157
    %s160 = sphi 0, %s159
    %s174 = sphi 0, %s160
    %s180 = sphi 0, %s182
    %s183 = sphi 0, %s180
    %s184 = sphi 0, %s183
    %s200 = sphi 0, %s184
  $region4: #{tpu_custom_call.1} parent=0 // loop_header_branch
    %16 = sbr.rel (%p14) target = $region8
  $region5: #{tpu_custom_call.1} parent=0 // loop_body
    %s18 = ssub.s32 %s13, 1
    %s19 = ssub.s32 %s13, 2
    %s20 = sadd.s32 %s13, 1
    %s21 = ssub.s32 %s13, %s20
    %p22 = scmp.eq.s32.totalorder %s21, 0
    %s24 = sadd.s32 %s23, 1
    %s25 = scalar_select %p22, %s23, %s24
    %p28 = pneg %p22
    %p29 = scmp.eq.s32.totalorder %s13, 1
    %p30 = por %p28, %p29
    %p31 = scmp.ne.s32.totalorder %s23, %s26
    %p32 = scmp.eq.s32.totalorder %s13, 0
    %p33 = por %p31, %p32
    %p34 = scmp.ne.s32.totalorder %s23, %s26
    %p35 = scmp.eq.s32.totalorder %s18, 1
    %p36 = por %p34, %p35
    %p37 = scmp.ne.s32.totalorder %s26, %s27
    %p38 = scmp.eq.s32.totalorder %s18, 0
    %p39 = por %p37, %p38
    %p40 = scmp.ne.s32.totalorder %s26, %s27
    %p41 = scmp.eq.s32.totalorder %s19, 1
    %p42 = por %p40, %p41
    %p44 = scmp.ne.s32.totalorder %s27, %s43
    %p45 = scmp.eq.s32.totalorder %s19, 0
    %p46 = por %p44, %p45
    %s47 = ssub.s32 %s13, %s20
    %p48 = scmp.eq.s32.totalorder %s47, 0
    %s50 = sadd.s32 %s49, 1
    %s51 = scalar_select %p48, %s49, %s50
    %p54 = pneg %p48
    %p55 = scmp.eq.s32.totalorder %s13, 1
    %p56 = por %p54, %p55
    %p57 = scmp.ne.s32.totalorder %s49, %s52
    %p58 = scmp.eq.s32.totalorder %s13, 0
    %p59 = por %p57, %p58
    %p60 = scmp.ne.s32.totalorder %s49, %s52
    %p61 = scmp.eq.s32.totalorder %s18, 1
    %p62 = por %p60, %p61
    %p63 = scmp.ne.s32.totalorder %s52, %s53
    %p64 = scmp.eq.s32.totalorder %s18, 0
    %p65 = por %p63, %p64
    %p66 = scmp.ne.s32.totalorder %s52, %s53
    %p67 = scmp.eq.s32.totalorder %s19, 1
    %p68 = por %p66, %p67
    %p70 = scmp.ne.s32.totalorder %s53, %s69
    %p71 = scmp.eq.s32.totalorder %s19, 0
    %p72 = por %p70, %p71
    %s74 = sadd.s32 %s73, 1
    %p77 = scmp.eq.s32.totalorder %s13, 1
    %p78 = scmp.ne.s32.totalorder %s73, %s75
    %p79 = scmp.eq.s32.totalorder %s13, 0
    %p80 = por %p78, %p79
    %p81 = scmp.ne.s32.totalorder %s73, %s75
    %p82 = scmp.eq.s32.totalorder %s18, 1
    %p83 = por %p81, %p82
    %p84 = scmp.ne.s32.totalorder %s75, %s76
    %p85 = scmp.eq.s32.totalorder %s18, 0
    %p86 = por %p84, %p85
    %p87 = scmp.ne.s32.totalorder %s75, %s76
    %p88 = scmp.eq.s32.totalorder %s19, 1
    %p89 = por %p87, %p88
    %p91 = scmp.ne.s32.totalorder %s76, %s90
    %p92 = scmp.eq.s32.totalorder %s19, 0
    %p93 = por %p91, %p92
    %s95 = sadd.s32 %s94, 1
    %p98 = scmp.eq.s32.totalorder %s13, 1
    %p99 = scmp.ne.s32.totalorder %s94, %s96
    %p100 = scmp.eq.s32.totalorder %s13, 0
    %p101 = por %p99, %p100
    %p102 = scmp.ne.s32.totalorder %s94, %s96
    %p103 = scmp.eq.s32.totalorder %s18, 1
    %p104 = por %p102, %p103
    %p105 = scmp.ne.s32.totalorder %s96, %s97
    %p106 = scmp.eq.s32.totalorder %s18, 0
    %p107 = por %p105, %p106
    %p108 = scmp.ne.s32.totalorder %s96, %s97
    %p109 = scmp.eq.s32.totalorder %s19, 1
    %p110 = por %p108, %p109
    %p112 = scmp.ne.s32.totalorder %s97, %s111
    %p113 = scmp.eq.s32.totalorder %s19, 0
    %p114 = por %p112, %p113
    %s116 = sadd.s32 %s115, 1
    %p119 = scmp.eq.s32.totalorder %s13, 1
    %p120 = scmp.ne.s32.totalorder %s115, %s117
    %p121 = scmp.eq.s32.totalorder %s13, 0
    %p122 = por %p120, %p121
    %p123 = scmp.ne.s32.totalorder %s115, %s117
    %p124 = scmp.eq.s32.totalorder %s18, 1
    %p125 = por %p123, %p124
    %p126 = scmp.ne.s32.totalorder %s117, %s118
    %p127 = scmp.eq.s32.totalorder %s18, 0
    %p128 = por %p126, %p127
    %p129 = scmp.ne.s32.totalorder %s117, %s118
    %p130 = scmp.eq.s32.totalorder %s19, 1
    %p131 = por %p129, %p130
    %p133 = scmp.ne.s32.totalorder %s118, %s132
    %p134 = scmp.eq.s32.totalorder %s19, 0
    %p135 = por %p133, %p134
    %s137 = sadd.s32 %s136, 1
    %p140 = scmp.eq.s32.totalorder %s13, 1
    %p141 = scmp.ne.s32.totalorder %s136, %s138
    %p142 = scmp.eq.s32.totalorder %s13, 0
    %p143 = por %p141, %p142
    %p144 = scmp.ne.s32.totalorder %s136, %s138
    %p145 = scmp.eq.s32.totalorder %s18, 1
    %p146 = por %p144, %p145
    %p147 = scmp.ne.s32.totalorder %s138, %s139
    %p148 = scmp.eq.s32.totalorder %s18, 0
    %p149 = por %p147, %p148
    %p150 = scmp.ne.s32.totalorder %s138, %s139
    %p151 = scmp.eq.s32.totalorder %s19, 1
    %p152 = por %p150, %p151
    %p154 = scmp.ne.s32.totalorder %s139, %s153
    %p155 = scmp.eq.s32.totalorder %s19, 0
    %p156 = por %p154, %p155
    %s158 = sadd.s32 %s157, 1
    %p161 = scmp.eq.s32.totalorder %s13, 1
    %p162 = scmp.ne.s32.totalorder %s157, %s159
    %p163 = scmp.eq.s32.totalorder %s13, 0
    %p164 = por %p162, %p163
    %p165 = scmp.ne.s32.totalorder %s157, %s159
    %p166 = scmp.eq.s32.totalorder %s18, 1
    %p167 = por %p165, %p166
    %p168 = scmp.ne.s32.totalorder %s159, %s160
    %p169 = scmp.eq.s32.totalorder %s18, 0
    %p170 = por %p168, %p169
    %p171 = scmp.ne.s32.totalorder %s159, %s160
    %p172 = scmp.eq.s32.totalorder %s19, 1
    %p173 = por %p171, %p172
    %p175 = scmp.ne.s32.totalorder %s160, %s174
    %p176 = scmp.eq.s32.totalorder %s19, 0
    %p177 = por %p175, %p176
    %s178 = ssub.s32 %s13, %s20
    %p179 = scmp.eq.s32.totalorder %s178, 0
    %s181 = sadd.s32 %s180, 1
    %s182 = scalar_select %p179, %s180, %s181
    %p185 = pneg %p179
    %p186 = scmp.eq.s32.totalorder %s13, 1
    %p187 = por %p185, %p186
    %p188 = scmp.ne.s32.totalorder %s180, %s183
    %p189 = scmp.eq.s32.totalorder %s13, 0
    %p190 = por %p188, %p189
    %p191 = scmp.ne.s32.totalorder %s180, %s183
    %p192 = scmp.eq.s32.totalorder %s18, 1
    %p193 = por %p191, %p192
    %p194 = scmp.ne.s32.totalorder %s183, %s184
    %p195 = scmp.eq.s32.totalorder %s18, 0
    %p196 = por %p194, %p195
    %p197 = scmp.ne.s32.totalorder %s183, %s184
    %p198 = scmp.eq.s32.totalorder %s19, 1
    %p199 = por %p197, %p198
    %p201 = scmp.ne.s32.totalorder %s184, %s200
    %p202 = scmp.eq.s32.totalorder %s19, 0
    %p203 = por %p201, %p202
    %p204 = scmp.le.s32.totalorder 1, %s13
    %p205 = scmp.lt.s32.totalorder %s13, 3
    %p206 = pnand %p204, %p205
    %p207 = pneg %p206
    // Predicated region
    $region9: #{tpu_custom_call.1} parent=5 // pred_check
      _
    $region10: #{tpu_custom_call.1} parent=5 // pred_check_branch
      %209 = sbr.rel (%p206) target = $region12
    $region11: #{tpu_custom_call.1} parent=5 // pred_region
      %s210 = ssub.s32 %s13, 1
      // Predicated region
      $region13: #{tpu_custom_call.1} parent=11 // pred_check
        %p211 = pneg %p86
      $region14: #{tpu_custom_call.1} parent=11 // pred_check_branch
        %213 = sbr.rel (%p211) target = $region16
      $region15: #{tpu_custom_call.1} parent=11 // pred_region
        _
      $region16: #{tpu_custom_call.1} parent=11 // pred_fallthru
        _
      // Predicated region
      $region17: #{tpu_custom_call.1} parent=11 // pred_check
        %p214 = pneg %p107
      $region18: #{tpu_custom_call.1} parent=11 // pred_check_branch
        %216 = sbr.rel (%p214) target = $region20
      $region19: #{tpu_custom_call.1} parent=11 // pred_region
        _
      $region20: #{tpu_custom_call.1} parent=11 // pred_fallthru
        _
      // Predicated region
      $region21: #{tpu_custom_call.1} parent=11 // pred_check
        %p217 = pneg %p128
      $region22: #{tpu_custom_call.1} parent=11 // pred_check_branch
        %219 = sbr.rel (%p217) target = $region24
      $region23: #{tpu_custom_call.1} parent=11 // pred_region
        _
      $region24: #{tpu_custom_call.1} parent=11 // pred_fallthru
        _
      // Predicated region
      $region25: #{tpu_custom_call.1} parent=11 // pred_check
        %p220 = pneg %p149
      $region26: #{tpu_custom_call.1} parent=11 // pred_check_branch
        %222 = sbr.rel (%p220) target = $region28
      $region27: #{tpu_custom_call.1} parent=11 // pred_region
        _
      $region28: #{tpu_custom_call.1} parent=11 // pred_fallthru
        _
      // Predicated region
      $region29: #{tpu_custom_call.1} parent=11 // pred_check
        %p223 = pneg %p170
      $region30: #{tpu_custom_call.1} parent=11 // pred_check_branch
        %225 = sbr.rel (%p223) target = $region32
      $region31: #{tpu_custom_call.1} parent=11 // pred_region
        _
      $region32: #{tpu_custom_call.1} parent=11 // pred_fallthru
        _
    $region12: #{tpu_custom_call.1} parent=5 // pred_fallthru
      _
    %p226 = scmp.lt.s32.totalorder %s13, 2
    // Predicated region
    $region33: #{tpu_custom_call.1} parent=5 // pred_check
      %p227 = pneg %p226
    $region34: #{tpu_custom_call.1} parent=5 // pred_check_branch
      %229 = sbr.rel (%p227) target = $region36
    $region35: #{tpu_custom_call.1} parent=5 // pred_region
      // Predicated region
      $region37: #{tpu_custom_call.1} parent=35 // pred_check
        %p230 = pneg %p33
      $region38: #{tpu_custom_call.1} parent=35 // pred_check_branch
        %232 = sbr.rel (%p230) target = $region40
      $region39: #{tpu_custom_call.1} parent=35 // pred_region
        %s233 = smul.u32 2, %s13
        %p234 = scmp.lt.s32.totalorder %s233, 3
        %s235 = scalar_select %p234, %s233, 3
        %s236 = smul.addr %s235, 8
        %s237 = scalar_lea.vmem %s0, %s236
        %s238 = smul.u32 2, %s13
      $region40: #{tpu_custom_call.1} parent=35 // pred_fallthru
        _
      // Predicated region
      $region41: #{tpu_custom_call.1} parent=35 // pred_check
        %p239 = pneg %p59
      $region42: #{tpu_custom_call.1} parent=35 // pred_check_branch
        %241 = sbr.rel (%p239) target = $region44
      $region43: #{tpu_custom_call.1} parent=35 // pred_region
        %s242 = smul.u32 2, %s13
        %p243 = scmp.lt.s32.totalorder %s242, 3
        %s244 = scalar_select %p243, %s242, 3
        %s245 = smul.addr %s244, 8
        %s246 = scalar_lea.vmem %s1, %s245
        %s247 = smul.u32 2, %s13
      $region44: #{tpu_custom_call.1} parent=35 // pred_fallthru
        _
    $region36: #{tpu_custom_call.1} parent=5 // pred_fallthru
      _
    %p248 = scmp.le.s32.totalorder 1, %s13
    %p249 = scmp.lt.s32.totalorder %s13, 3
    %p250 = pnand %p248, %p249
    %p251 = pneg %p250
    // Predicated region
    $region45: #{tpu_custom_call.1} parent=5 // pred_check
      _
    $region46: #{tpu_custom_call.1} parent=5 // pred_check_branch
      %253 = sbr.rel (%p250) target = $region48
    $region47: #{tpu_custom_call.1} parent=5 // pred_region
      %s254 = ssub.s32 %s13, 1
      %s255 = smul.u32 2, %s18
      %p256 = scmp.lt.s32.totalorder %s255, 3
      %s257 = scalar_select %p256, %s255, 3
      %s258 = smul.addr %s257, 8
      %s259 = scalar_lea.vmem %s0, %s258
      %p260 = pneg %p39
      %p261 = pneg %p36
      %s262 = smul.u32 2, %s18
      %p263 = scmp.lt.s32.totalorder %s262, 3
      %s264 = scalar_select %p263, %s262, 3
      %s265 = smul.addr %s264, 8
      %s266 = scalar_lea.vmem %s1, %s265
      %p267 = pneg %p65
      %p268 = pneg %p62
      %p269 = pneg %p86
      %p270 = pneg %p83
      %p271 = pneg %p107
      %p272 = pneg %p104
      %p273 = pneg %p128
      %p274 = pneg %p125
      %p275 = pneg %p149
      %p276 = pneg %p146
      %p277 = pneg %p170
      %p278 = pneg %p167
      %p279 = pneg %p196
      %p280 = pneg %p193
      %s281 = smul.u32 2, %s18
      %p282 = scmp.lt.s32.totalorder %s281, 3
      %s283 = scalar_select %p282, %s281, 3
      %s284 = smul.addr %s283, 8
      %s285 = scalar_lea.vmem %s7, %s284
      %s286 = smul.u32 2, %s18
      %p287 = scmp.lt.s32.totalorder %s286, 3
      %s288 = scalar_select %p287, %s286, 3
      %s289 = smul.addr %s288, 8
      %s290 = scalar_lea.vmem %s0, %s289
      %s291 = smul.u32 2, %s18
      %s292 = smul.u32 2, %s18
      %p293 = scmp.lt.s32.totalorder %s292, 3
      %s294 = scalar_select %p293, %s292, 3
      %s295 = smul.addr %s294, 8
      %s296 = scalar_lea.vmem %s1, %s295
      %s297 = smul.u32 2, %s18
      %s298 = smul.u32 2, %s18
      %p299 = scmp.lt.s32.totalorder %s298, 3
      %s300 = scalar_select %p299, %s298, 3
      %s301 = smul.addr %s300, 8
      %s302 = scalar_lea.vmem %s7, %s301
      %s303 = smul.u32 2, %s18
      %v304 = vld [vmem:[%s2] sm:$0xff]
      %v305 = vld [vmem:[%s2 + $0x8] sm:$0xff]
      %v306 = vld [vmem:[%s2 + $0x10] sm:$0xff]
      %v307 = vld [vmem:[%s2 + $0x18] sm:$0xff]
      %v308 = vld [vmem:[%s2 + $0x20] sm:$0xff]
      %v309 = vld [vmem:[%s2 + $0x28] sm:$0xff]
      %v310 = vld [vmem:[%s2 + $0x30] sm:$0xff]
      %v311 = vld [vmem:[%s2 + $0x38] sm:$0xff]
      %v312 = vld [vmem:[%s2 + $0x40] sm:$0xff]
      %v313 = vld [vmem:[%s2 + $0x48] sm:$0xff]
      %v314 = vld [vmem:[%s2 + $0x50] sm:$0xff]
      %v315 = vld [vmem:[%s2 + $0x58] sm:$0xff]
      %v316 = vld [vmem:[%s2 + $0x60] sm:$0xff]
      %v317 = vld [vmem:[%s2 + $0x68] sm:$0xff]
      %v318 = vld [vmem:[%s2 + $0x70] sm:$0xff]
      %v319 = vld [vmem:[%s2 + $0x78] sm:$0xff]
      %v320 = vld [vmem:[%s2 + $0x80] sm:$0xff]
      %v321 = vld [vmem:[%s2 + $0x88] sm:$0xff]
      %v322 = vld [vmem:[%s2 + $0x90] sm:$0xff]
      %v323 = vld [vmem:[%s2 + $0x98] sm:$0xff]
      %v324 = vld [vmem:[%s2 + $0xa0] sm:$0xff]
      %v325 = vld [vmem:[%s2 + $0xa8] sm:$0xff]
      %v326 = vld [vmem:[%s2 + $0xb0] sm:$0xff]
      %v327 = vld [vmem:[%s2 + $0xb8] sm:$0xff]
      %v328 = vld [vmem:[%s2 + $0xc0] sm:$0xff]
      %v329 = vld [vmem:[%s2 + $0xc8] sm:$0xff]
      %v330 = vld [vmem:[%s2 + $0xd0] sm:$0xff]
      %v331 = vld [vmem:[%s2 + $0xd8] sm:$0xff]
      %v332 = vld [vmem:[%s2 + $0xe0] sm:$0xff]
      %v333 = vld [vmem:[%s2 + $0xe8] sm:$0xff]
      %v334 = vld [vmem:[%s2 + $0xf0] sm:$0xff]
      %v335 = vld [vmem:[%s2 + $0xf8] sm:$0xff]
      %v336 = vld [vmem:[%s3] sm:$0x3]
      %v337 = vld [vmem:[%s290] sm:$0xff]
      %v338 = vld [vmem:[%s290 + $0x8] sm:$0xff]
      %v340 = vlaneseq
      %v341 = vshrl.u32 %v340, 7
      %v342 = vsub.s32 0, %v341
      %v343 = vrot.slane %v336, %v342
      %v344 = vlaneseq
      %v345 = vshrl.u32 %v344, 7
      %v346 = vsub.s32 1, %v345
      %v347 = vrot.slane %v336, %v346
      %350 = vmatprep.subr.mxu0 %v305
      %351 = vmatpush1.msra.mxu0 %v304
      %352 = vmatprep.subr.mxu0 %v307
      %353 = vmatpush1.msra.mxu0 %v306
      %354 = vmatprep.subr.mxu0 %v309
      %355 = vmatpush1.msra.mxu0 %v308
      %356 = vmatprep.subr.mxu0 %v311
      %357 = vmatpush1.msra.mxu0 %v310
      %358 = vmatprep.subr.mxu0 %v313
      %359 = vmatpush1.msra.mxu0 %v312
      %360 = vmatprep.subr.mxu0 %v315
      %361 = vmatpush1.msra.mxu0 %v314
      %362 = vmatprep.subr.mxu0 %v317
      %363 = vmatpush1.msra.mxu0 %v316
      %364 = vmatprep.subr.mxu0 %v319
      %365 = vmatpush1.msra.mxu0 %v318
      %366 = vmatprep.subr.mxu0 %v321
      %367 = vmatpush1.msra.mxu0 %v320
      %368 = vmatprep.subr.mxu0 %v323
      %369 = vmatpush1.msra.mxu0 %v322
      %370 = vmatprep.subr.mxu0 %v325
      %371 = vmatpush1.msra.mxu0 %v324
      %372 = vmatprep.subr.mxu0 %v327
      %373 = vmatpush1.msra.mxu0 %v326
      %374 = vmatprep.subr.mxu0 %v329
      %375 = vmatpush1.msra.mxu0 %v328
      %376 = vmatprep.subr.mxu0 %v331
      %377 = vmatpush1.msra.mxu0 %v330
      %378 = vmatprep.subr.mxu0 %v333
      %379 = vmatpush1.msra.mxu0 %v332
      %380 = vmatprep.subr.mxu0 %v335
      %381 = vmatpush1.msra.mxu0 %v334
      %382 = vmatprep.subr.mxu0 0.0
      %383 = vmatpush1.msra.mxu0 0.0
      %384 = vmatprep.subr.mxu0 0.0
      %385 = vmatpush1.msra.mxu0 0.0
      %386 = vmatprep.subr.mxu0 0.0
      %387 = vmatpush1.msra.mxu0 0.0
      %388 = vmatprep.subr.mxu0 0.0
      %389 = vmatpush1.msra.mxu0 0.0
      %390 = vmatprep.subr.mxu0 0.0
      %391 = vmatpush1.msra.mxu0 0.0
      %392 = vmatprep.subr.mxu0 0.0
      %393 = vmatpush1.msra.mxu0 0.0
      %394 = vmatprep.subr.mxu0 0.0
      %395 = vmatpush1.msra.mxu0 0.0
      %396 = vmatprep.subr.mxu0 0.0
      %397 = vmatpush1.msra.mxu0 0.0
      %398 = vmatprep.subr.mxu0 0.0
      %399 = vmatpush1.msra.mxu0 0.0
      %400 = vmatprep.subr.mxu0 0.0
      %401 = vmatpush1.msra.mxu0 0.0
      %402 = vmatprep.subr.mxu0 0.0
      %403 = vmatpush1.msra.mxu0 0.0
      %404 = vmatprep.subr.mxu0 0.0
      %405 = vmatpush1.msra.mxu0 0.0
      %406 = vmatprep.subr.mxu0 0.0
      %407 = vmatpush1.msra.mxu0 0.0
      %408 = vmatprep.subr.mxu0 0.0
      %409 = vmatpush1.msra.mxu0 0.0
      %410 = vmatprep.subr.mxu0 0.0
      %411 = vmatpush1.msra.mxu0 0.0
      %412 = vmatprep.subr.mxu0 0.0
      %413 = vmatpush1.msra.mxu0 0.0
      %414 = vmatprep.mubr.f32.mxu0 0.0
      %415 = vmatmul.mubr.f32.gmra.mrb[0].mxu0 %v337
      %v416 = vpop.f32.mrb[0].mxu0
      %v417 = vadd.f32 %v343, %v416
      %v418 = vpop.f32.mrb[0].mxu0
      %v419 = vadd.f32 %v347, %v418
      %420 = vmatprep.mubr.f32.mxu0 0.0
      %421 = vmatmul.mubr.f32.gmra.mrb[0].mxu0 %v338
      %v422 = vpop.f32.mrb[0].mxu0
      %v423 = vadd.f32 %v343, %v422
      %v424 = vpop.f32.mrb[0].mxu0
      %v425 = vadd.f32 %v347, %v424
      %426 = vdwg.mxu0
      %v427 = vmax.f32 %v417, 0.0
      %v428 = vmax.f32 %v419, 0.0
      %v429 = vmax.f32 %v423, 0.0
      %v430 = vmax.f32 %v425, 0.0
      %v431 = vld [vmem:[%s296] sm:$0xff]
      %v432 = vld [vmem:[%s296 + $0x8] sm:$0xff]
      %433 = vmatprep.subr.mxu0 %v305
      %434 = vmatpush1.msra.mxu0 %v304
      %435 = vmatprep.subr.mxu0 %v307
      %436 = vmatpush1.msra.mxu0 %v306
      %437 = vmatprep.subr.mxu0 %v309
      %438 = vmatpush1.msra.mxu0 %v308
      %439 = vmatprep.subr.mxu0 %v311
      %440 = vmatpush1.msra.mxu0 %v310
      %441 = vmatprep.subr.mxu0 %v313
      %442 = vmatpush1.msra.mxu0 %v312
      %443 = vmatprep.subr.mxu0 %v315
      %444 = vmatpush1.msra.mxu0 %v314
      %445 = vmatprep.subr.mxu0 %v317
      %446 = vmatpush1.msra.mxu0 %v316
      %447 = vmatprep.subr.mxu0 %v319
      %448 = vmatpush1.msra.mxu0 %v318
      %449 = vmatprep.subr.mxu0 %v321
      %450 = vmatpush1.msra.mxu0 %v320
      %451 = vmatprep.subr.mxu0 %v323
      %452 = vmatpush1.msra.mxu0 %v322
      %453 = vmatprep.subr.mxu0 %v325
      %454 = vmatpush1.msra.mxu0 %v324
      %455 = vmatprep.subr.mxu0 %v327
      %456 = vmatpush1.msra.mxu0 %v326
      %457 = vmatprep.subr.mxu0 %v329
      %458 = vmatpush1.msra.mxu0 %v328
      %459 = vmatprep.subr.mxu0 %v331
      %460 = vmatpush1.msra.mxu0 %v330
      %461 = vmatprep.subr.mxu0 %v333
      %462 = vmatpush1.msra.mxu0 %v332
      %463 = vmatprep.subr.mxu0 %v335
      %464 = vmatpush1.msra.mxu0 %v334
      %465 = vmatprep.subr.mxu0 0.0
      %466 = vmatpush1.msra.mxu0 0.0
      %467 = vmatprep.subr.mxu0 0.0
      %468 = vmatpush1.msra.mxu0 0.0
      %469 = vmatprep.subr.mxu0 0.0
      %470 = vmatpush1.msra.mxu0 0.0
      %471 = vmatprep.subr.mxu0 0.0
      %472 = vmatpush1.msra.mxu0 0.0
      %473 = vmatprep.subr.mxu0 0.0
      %474 = vmatpush1.msra.mxu0 0.0
      %475 = vmatprep.subr.mxu0 0.0
      %476 = vmatpush1.msra.mxu0 0.0
      %477 = vmatprep.subr.mxu0 0.0
      %478 = vmatpush1.msra.mxu0 0.0
      %479 = vmatprep.subr.mxu0 0.0
      %480 = vmatpush1.msra.mxu0 0.0
      %481 = vmatprep.subr.mxu0 0.0
      %482 = vmatpush1.msra.mxu0 0.0
      %483 = vmatprep.subr.mxu0 0.0
      %484 = vmatpush1.msra.mxu0 0.0
      %485 = vmatprep.subr.mxu0 0.0
      %486 = vmatpush1.msra.mxu0 0.0
      %487 = vmatprep.subr.mxu0 0.0
      %488 = vmatpush1.msra.mxu0 0.0
      %489 = vmatprep.subr.mxu0 0.0
      %490 = vmatpush1.msra.mxu0 0.0
      %491 = vmatprep.subr.mxu0 0.0
      %492 = vmatpush1.msra.mxu0 0.0
      %493 = vmatprep.subr.mxu0 0.0
      %494 = vmatpush1.msra.mxu0 0.0
      %495 = vmatprep.subr.mxu0 0.0
      %496 = vmatpush1.msra.mxu0 0.0
      %497 = vmatprep.mubr.f32.mxu0 0.0
      %498 = vmatmul.mubr.f32.gmra.mrb[0].mxu0 %v431
      %v499 = vpop.f32.mrb[0].mxu0
      %v500 = vadd.f32 %v343, %v499
      %v501 = vpop.f32.mrb[0].mxu0
      %v502 = vadd.f32 %v347, %v501
      %503 = vmatprep.mubr.f32.mxu0 0.0
      %504 = vmatmul.mubr.f32.gmra.mrb[0].mxu0 %v432
      %v505 = vpop.f32.mrb[0].mxu0
      %v506 = vadd.f32 %v343, %v505
      %v507 = vpop.f32.mrb[0].mxu0
      %v508 = vadd.f32 %v347, %v507
      %509 = vdwg.mxu0
      %v510 = vmax.f32 %v500, 0.0
      %v511 = vmax.f32 %v502, 0.0
      %v512 = vmax.f32 %v506, 0.0
      %v513 = vmax.f32 %v508, 0.0
      %v514 = vld [vmem:[%s4] sm:$0xff]
      %v515 = vld [vmem:[%s4 + $0x8] sm:$0xff]
      %v516 = vld [vmem:[%s4 + $0x10] sm:$0xff]
      %v517 = vld [vmem:[%s4 + $0x18] sm:$0xff]
      %v518 = vld [vmem:[%s4 + $0x20] sm:$0xff]
      %v519 = vld [vmem:[%s4 + $0x28] sm:$0xff]
      %v520 = vld [vmem:[%s4 + $0x30] sm:$0xff]
      %v521 = vld [vmem:[%s4 + $0x38] sm:$0xff]
      %v522 = vld [vmem:[%s4 + $0x40] sm:$0xff]
      %v523 = vld [vmem:[%s4 + $0x48] sm:$0xff]
      %v524 = vld [vmem:[%s4 + $0x50] sm:$0xff]
      %v525 = vld [vmem:[%s4 + $0x58] sm:$0xff]
      %v526 = vld [vmem:[%s4 + $0x60] sm:$0xff]
      %v527 = vld [vmem:[%s4 + $0x68] sm:$0xff]
      %v528 = vld [vmem:[%s4 + $0x70] sm:$0xff]
      %v529 = vld [vmem:[%s4 + $0x78] sm:$0xff]
      %v530 = vld [vmem:[%s4 + $0x80] sm:$0xff]
      %v531 = vld [vmem:[%s4 + $0x88] sm:$0xff]
      %v532 = vld [vmem:[%s4 + $0x90] sm:$0xff]
      %v533 = vld [vmem:[%s4 + $0x98] sm:$0xff]
      %v534 = vld [vmem:[%s5] sm:$0xff]
      %v535 = vld [vmem:[%s5 + $0x8] sm:$0xff]
      %v536 = vld [vmem:[%s5 + $0x10] sm:$0xff]
      %v537 = vld [vmem:[%s5 + $0x18] sm:$0xff]
      %v538 = vld [vmem:[%s5 + $0x20] sm:$0xff]
      %v539 = vld [vmem:[%s5 + $0x28] sm:$0xff]
      %v540 = vld [vmem:[%s5 + $0x30] sm:$0xff]
      %v541 = vld [vmem:[%s5 + $0x38] sm:$0xff]
      %v542 = vld [vmem:[%s5 + $0x40] sm:$0xff]
      %v543 = vld [vmem:[%s5 + $0x48] sm:$0xff]
      %v544 = vld [vmem:[%s5 + $0x50] sm:$0xff]
      %v545 = vld [vmem:[%s5 + $0x58] sm:$0xff]
      %v546 = vld [vmem:[%s5 + $0x60] sm:$0xff]
      %v547 = vld [vmem:[%s5 + $0x68] sm:$0xff]
      %v548 = vld [vmem:[%s5 + $0x70] sm:$0xff]
      %v549 = vld [vmem:[%s5 + $0x78] sm:$0xff]
      %v550 = vld [vmem:[%s5 + $0x80] sm:$0xff]
      %v551 = vld [vmem:[%s5 + $0x88] sm:$0xff]
      %v552 = vld [vmem:[%s5 + $0x90] sm:$0xff]
      %v553 = vld [vmem:[%s5 + $0x98] sm:$0xff]
      %vm554 = vcmask 261120
      %v556 = vsel %vm554, %v511, 0
      %v559 = vsel %vm554, %v513, 0
      %561 = vmatprep.subr.mxu0 0.0
      %562 = vmatpush1.msra.mxu0 %v534
      %563 = vmatprep.subr.mxu0 0.0
      %564 = vmatpush1.msra.mxu0 %v535
      %565 = vmatprep.subr.mxu0 0.0
      %566 = vmatpush1.msra.mxu0 %v536
      %567 = vmatprep.subr.mxu0 0.0
      %568 = vmatpush1.msra.mxu0 %v537
      %569 = vmatprep.subr.mxu0 0.0
      %570 = vmatpush1.msra.mxu0 %v538
      %571 = vmatprep.subr.mxu0 0.0
      %572 = vmatpush1.msra.mxu0 %v539
      %573 = vmatprep.subr.mxu0 0.0
      %574 = vmatpush1.msra.mxu0 %v540
      %575 = vmatprep.subr.mxu0 0.0
      %576 = vmatpush1.msra.mxu0 %v541
      %577 = vmatprep.subr.mxu0 0.0
      %578 = vmatpush1.msra.mxu0 %v542
      %579 = vmatprep.subr.mxu0 0.0
      %580 = vmatpush1.msra.mxu0 %v543
      %581 = vmatprep.subr.mxu0 0.0
      %582 = vmatpush1.msra.mxu0 %v544
      %583 = vmatprep.subr.mxu0 0.0
      %584 = vmatpush1.msra.mxu0 %v545
      %585 = vmatprep.subr.mxu0 0.0
      %586 = vmatpush1.msra.mxu0 %v546
      %587 = vmatprep.subr.mxu0 0.0
      %588 = vmatpush1.msra.mxu0 %v547
      %589 = vmatprep.subr.mxu0 0.0
      %590 = vmatpush1.msra.mxu0 %v548
      %591 = vmatprep.subr.mxu0 0.0
      %592 = vmatpush1.msra.mxu0 %v549
      %593 = vmatprep.subr.mxu0 0.0
      %594 = vmatpush1.msra.mxu0 %v550
      %595 = vmatprep.subr.mxu0 0.0
      %596 = vmatpush1.msra.mxu0 %v551
      %597 = vmatprep.subr.mxu0 0.0
      %598 = vmatpush1.msra.mxu0 %v552
      %599 = vmatprep.subr.mxu0 0.0
      %600 = vmatpush1.msra.mxu0 %v553
      %601 = vmatprep.subr.mxu0 0.0
      %602 = vmatpush1.msra.mxu0 0.0
      %603 = vmatprep.subr.mxu0 0.0
      %604 = vmatpush1.msra.mxu0 0.0
      %605 = vmatprep.subr.mxu0 0.0
      %606 = vmatpush1.msra.mxu0 0.0
      %607 = vmatprep.subr.mxu0 0.0
      %608 = vmatpush1.msra.mxu0 0.0
      %609 = vmatprep.subr.mxu0 0.0
      %610 = vmatpush1.msra.mxu0 0.0
      %611 = vmatprep.subr.mxu0 0.0
      %612 = vmatpush1.msra.mxu0 0.0
      %613 = vmatprep.subr.mxu0 0.0
      %614 = vmatpush1.msra.mxu0 0.0
      %615 = vmatprep.subr.mxu0 0.0
      %616 = vmatpush1.msra.mxu0 0.0
      %617 = vmatprep.subr.mxu0 0.0
      %618 = vmatpush1.msra.mxu0 0.0
      %619 = vmatprep.subr.mxu0 0.0
      %620 = vmatpush1.msra.mxu0 0.0
      %621 = vmatprep.subr.mxu0 0.0
      %622 = vmatpush1.msra.mxu0 0.0
      %623 = vmatprep.subr.mxu0 0.0
      %624 = vmatpush1.msra.mxu0 0.0
      %625 = vmatprep.mubr.f32.mxu0 %v556
      %626 = vmatmul.mubr.f32.gmra.mrb[0].mxu0 %v510
      %v627 = vpop.f32.mrb[0].mxu0
      %v628 = vadd.f32 0.0, %v627
      %v629 = vpop.f32.mrb[0].mxu0
      %630 = vmatprep.mubr.f32.mxu0 %v559
      %631 = vmatmul.mubr.f32.gmra.mrb[0].mxu0 %v512
      %v632 = vpop.f32.mrb[0].mxu0
      %v633 = vadd.f32 0.0, %v632
      %v634 = vpop.f32.mrb[0].mxu0
      %635 = vdwg.mxu0
      %v637 = vsel %vm554, %v428, 0
      %v640 = vsel %vm554, %v430, 0
      %642 = vmatprep.subr.mxu0 0.0
      %643 = vmatpush1.msra.mxu0 %v514
      %644 = vmatprep.subr.mxu0 0.0
      %645 = vmatpush1.msra.mxu0 %v515
      %646 = vmatprep.subr.mxu0 0.0
      %647 = vmatpush1.msra.mxu0 %v516
      %648 = vmatprep.subr.mxu0 0.0
      %649 = vmatpush1.msra.mxu0 %v517
      %650 = vmatprep.subr.mxu0 0.0
      %651 = vmatpush1.msra.mxu0 %v518
      %652 = vmatprep.subr.mxu0 0.0
      %653 = vmatpush1.msra.mxu0 %v519
      %654 = vmatprep.subr.mxu0 0.0
      %655 = vmatpush1.msra.mxu0 %v520
      %656 = vmatprep.subr.mxu0 0.0
      %657 = vmatpush1.msra.mxu0 %v521
      %658 = vmatprep.subr.mxu0 0.0
      %659 = vmatpush1.msra.mxu0 %v522
      %660 = vmatprep.subr.mxu0 0.0
      %661 = vmatpush1.msra.mxu0 %v523
      %662 = vmatprep.subr.mxu0 0.0
      %663 = vmatpush1.msra.mxu0 %v524
      %664 = vmatprep.subr.mxu0 0.0
      %665 = vmatpush1.msra.mxu0 %v525
      %666 = vmatprep.subr.mxu0 0.0
      %667 = vmatpush1.msra.mxu0 %v526
      %668 = vmatprep.subr.mxu0 0.0
      %669 = vmatpush1.msra.mxu0 %v527
      %670 = vmatprep.subr.mxu0 0.0
      %671 = vmatpush1.msra.mxu0 %v528
      %672 = vmatprep.subr.mxu0 0.0
      %673 = vmatpush1.msra.mxu0 %v529
      %674 = vmatprep.subr.mxu0 0.0
      %675 = vmatpush1.msra.mxu0 %v530
      %676 = vmatprep.subr.mxu0 0.0
      %677 = vmatpush1.msra.mxu0 %v531
      %678 = vmatprep.subr.mxu0 0.0
      %679 = vmatpush1.msra.mxu0 %v532
      %680 = vmatprep.subr.mxu0 0.0
      %681 = vmatpush1.msra.mxu0 %v533
      %682 = vmatprep.subr.mxu0 0.0
      %683 = vmatpush1.msra.mxu0 0.0
      %684 = vmatprep.subr.mxu0 0.0
      %685 = vmatpush1.msra.mxu0 0.0
      %686 = vmatprep.subr.mxu0 0.0
      %687 = vmatpush1.msra.mxu0 0.0
      %688 = vmatprep.subr.mxu0 0.0
      %689 = vmatpush1.msra.mxu0 0.0
      %690 = vmatprep.subr.mxu0 0.0
      %691 = vmatpush1.msra.mxu0 0.0
      %692 = vmatprep.subr.mxu0 0.0
      %693 = vmatpush1.msra.mxu0 0.0
      %694 = vmatprep.subr.mxu0 0.0
      %695 = vmatpush1.msra.mxu0 0.0
      %696 = vmatprep.subr.mxu0 0.0
      %697 = vmatpush1.msra.mxu0 0.0
      %698 = vmatprep.subr.mxu0 0.0
      %699 = vmatpush1.msra.mxu0 0.0
      %700 = vmatprep.subr.mxu0 0.0
      %701 = vmatpush1.msra.mxu0 0.0
      %702 = vmatprep.subr.mxu0 0.0
      %703 = vmatpush1.msra.mxu0 0.0
      %704 = vmatprep.subr.mxu0 0.0
      %705 = vmatpush1.msra.mxu0 0.0
      %706 = vmatprep.mubr.f32.mxu0 %v637
      %707 = vmatmul.mubr.f32.gmra.mrb[0].mxu0 %v427
      %v708 = vpop.f32.mrb[0].mxu0
      %v709 = vadd.f32 %v628, %v708
      %v710 = vpop.f32.mrb[0].mxu0
      %711 = vmatprep.mubr.f32.mxu0 %v640
      %712 = vmatmul.mubr.f32.gmra.mrb[0].mxu0 %v429
      %v713 = vpop.f32.mrb[0].mxu0
      %v714 = vadd.f32 %v633, %v713
      %v715 = vpop.f32.mrb[0].mxu0
      %716 = vdwg.mxu0
      %v717 = vld [vmem:[%s6] sm:$0x1]
      %v719 = vlaneseq
      %v720 = vshrl.u32 %v719, 7
      %v721 = vsub.s32 0, %v720
      %v722 = vrot.slane %v717, %v721
      %v724 = vadd.f32 %v709, %v722
      %v725 = vadd.f32 %v714, %v722
      %vm726 = vcmask 64512
      %727 = vst.msk [vmem:[%s302] sm:$0xff] %vm726, %v724
      %728 = vst.msk [vmem:[%s302 + $0x8] sm:$0xff] %vm726, %v725
      %s729 = smul.u32 2, %s18
      %p730 = scmp.lt.s32.totalorder %s729, 3
      %s731 = scalar_select %p730, %s729, 3
      %s732 = smul.addr %s731, 8
      %s733 = scalar_lea.vmem %s7, %s732
      // Predicated region
      $region49: #{tpu_custom_call.1} parent=47 // pred_check
        %p734 = pneg %p193
      $region50: #{tpu_custom_call.1} parent=47 // pred_check_branch
        %736 = sbr.rel (%p734) target = $region52
      $region51: #{tpu_custom_call.1} parent=47 // pred_region
        %s737 = smul.u32 2, %s18
      $region52: #{tpu_custom_call.1} parent=47 // pred_fallthru
        _
    $region48: #{tpu_custom_call.1} parent=5 // pred_fallthru
      _
    %p738 = scmp.le.s32.totalorder 2, %s13
    // Predicated region
    $region53: #{tpu_custom_call.1} parent=5 // pred_check
      %p739 = pneg %p738
    $region54: #{tpu_custom_call.1} parent=5 // pred_check_branch
      %741 = sbr.rel (%p739) target = $region56
    $region55: #{tpu_custom_call.1} parent=5 // pred_region
      %s742 = ssub.s32 %s13, 2
      // Predicated region
      $region57: #{tpu_custom_call.1} parent=55 // pred_check
        %p743 = pneg %p199
      $region58: #{tpu_custom_call.1} parent=55 // pred_check_branch
        %745 = sbr.rel (%p743) target = $region60
      $region59: #{tpu_custom_call.1} parent=55 // pred_region
        %s746 = smul.u32 2, %s19
        %p747 = scmp.lt.s32.totalorder %s746, 3
        %s748 = scalar_select %p747, %s746, 3
        %s749 = smul.addr %s748, 8
        %s750 = scalar_lea.vmem %s7, %s749
      $region60: #{tpu_custom_call.1} parent=55 // pred_fallthru
        _
    $region56: #{tpu_custom_call.1} parent=5 // pred_fallthru
      _
  $region6: #{tpu_custom_call.1} parent=0 // loop_footer
    %s17 = sadd.s32 1, %s13
  $region7: #{tpu_custom_call.1} parent=0 // loop_footer_branch
    %12 = sbr.rel target = $region3
  $region8: #{tpu_custom_call.1} parent=0 // loop_exit
    _

</llo_original>
